<compile_context>
chip_gen: v6e
topology: v6e:2x2x1
jax: 0.10.0
libtpu: 0.0.40
codegen_flags: <defaults>
</compile_context>

<pallas_src>
import functools

import jax
import jax.numpy as jnp
from jax import lax
from jax.experimental import pallas as pl
from jax.experimental.pallas import tpu as pltpu


def _round_up(x, m):
    return (x + m - 1) // m * m


def _cdiv(a, b):
    return (a + b - 1) // b


def _vmem_estimate(t, cin_p, cout_p, cbytes, obytes):
    """Rough per-core VMEM residency for one grid step (bytes)."""
    win = t + 8
    weights = (3 * cin_p * cout_p + 3 * cout_p * cout_p) * cbytes + 4 * cout_p * 4
    streams = 2 * t * cin_p * cbytes + 2 * 8 * cin_p * cbytes + 2 * t * cout_p * obytes
    scratch = win * cin_p * cbytes + (t + 2) * cout_p * 4
    live = (t + 2) * cout_p * (4 + cbytes) + win * cin_p * cbytes
    return weights + streams + scratch + live


# --------------------------------------------------------------------------
# Kernel
# --------------------------------------------------------------------------
def _reduction_block_kernel(xc_ref,   # (T, Cin_p)      central rows (stride-2 selected, zero padded)
                            xh_ref,   # (8, Cin_p)      halo rows = first 8 rows of the next tile
                            w01_ref,  # (3, Cin_p, Cout_p)  fused (resize*bn0) @ (conv1*bn1) taps
                            w2_ref,   # (3, Cout_p, Cout_p) conv2 taps * bn2 scale
                            sh_ref,   # (4, Cout_p) f32: [shift01, shift2, corr0, corr2]
                            o_ref,    # (T, Cout_p)
                            xw_ref,   # scratch (T+8, Cin_p)   stitched window
                            y_ref,    # scratch (T+2, Cout_p) f32 pre-ReLU conv1 output
                            *, tile, lh, compute_dtype):
    T = tile
    j = pl.program_id(1)
    cout_p = o_ref.shape[-1]

    # Stitch central + halo rows into one contiguous window (sublane-aligned).
    xw_ref[0:T, :] = xc_ref[...]
    xw_ref[T:T + 8, :] = xh_ref[...]
    xw = xw_ref[...]

    # ---- fused (resize_conv+bn0) o (conv1+bn1): one matmul layer, 3 taps ----
    y = jnp.dot(xw[0:T + 2], w01_ref[0], preferred_element_type=jnp.float32)
    y = y + jnp.dot(xw[1:T + 3], w01_ref[1], preferred_element_type=jnp.float32)
    y = y + jnp.dot(xw[2:T + 4], w01_ref[2], preferred_element_type=jnp.float32)
    y_ref[...] = y + sh_ref[0:1, :]

    # ---- boundary fixups: only edge tiles pay for these ----
    @pl.when(j == 0)
    def _():
        # local row 0 is conv2's left zero-padding row -> must be exactly zero
        y_ref[0:1, :] = jnp.zeros((1, cout_p), jnp.float32)
        # global row 0: conv1's left zero-padding removes the tap-0 shift term
        y_ref[1:2, :] = y_ref[1:2, :] - sh_ref[2:3, :]

    lr2 = lh - j * T  # local row holding global row lh-1 (if inside this window)

    @pl.when((lr2 >= 0) & (lr2 <= T + 1))
    def _():
        # global row lh-1: conv1's right zero-padding removes the tap-2 shift term
        ridx = lax.broadcasted_iota(jnp.int32, (T + 2, 1), 0)
        y_ref[...] = y_ref[...] - jnp.where(ridx == lr2, 1.0, 0.0) * sh_ref[3:4, :]

    @pl.when(j == pl.num_programs(1) - 1)
    def _():
        # rows past the end of the sequence are conv2's right zero-padding
        ridx = lax.broadcasted_iota(jnp.int32, (T + 2, 1), 0)
        y_ref[...] = jnp.where(ridx > lr2, 0.0, y_ref[...])

    ya = jnp.maximum(y_ref[...], 0.0).astype(compute_dtype)   # (T+2, Cout_p)

    # ---- conv2 + bn2 + ReLU ----
    z = jnp.dot(ya[0:T], w2_ref[0], preferred_element_type=jnp.float32)
    z = z + jnp.dot(ya[1:T + 1], w2_ref[1], preferred_element_type=jnp.float32)
    z = z + jnp.dot(ya[2:T + 2], w2_ref[2], preferred_element_type=jnp.float32)
    o_ref[...] = jnp.maximum(z + sh_ref[1:2, :], 0.0).astype(o_ref.dtype)


# --------------------------------------------------------------------------
# Weight folding / packing (hoistable: call once, reuse across invocations)
# --------------------------------------------------------------------------
def pack_reduction_block_params(params, *, compute_dtype=jnp.bfloat16, eps=1e-5):
    w0 = jnp.asarray(params["w0"], jnp.float32)        # (Cout, Cin, 1)
    cout, cin, _ = w0.shape
    assert params["w1"].shape[2] == 3 and params["w2"].shape[2] == 3, \
        "only kernel_size=3 (padding=1) is implemented"

    def bn_fold(w, b, bn):       # scale the last (output-channel) axis
        gamma, beta, mean, var = (jnp.asarray(a, jnp.float32) for a in bn)
        s = gamma / jnp.sqrt(var + eps)
        return w * s, jnp.asarray(b, jnp.float32) * s + beta - mean * s

    # resize_conv (k=1, stride=2) + bn0, as (Cin, Cout)
    w0s, shift0 = bn_fold(jnp.transpose(w0[:, :, 0]), params["b0"], params["bn0"])
    # conv1 + bn1 taps, as (3, Cout_in, Cout_out)
    w1s, shift1 = bn_fold(jnp.transpose(jnp.asarray(params["w1"], jnp.float32), (2, 1, 0)),
                          params["b1"], params["bn1"])
    # conv2 + bn2 taps
    w2s, shift2 = bn_fold(jnp.transpose(jnp.asarray(params["w2"], jnp.float32), (2, 1, 0)),
                          params["b2"], params["bn2"])

    # fuse layer 0 into conv1 (no nonlinearity in between)
    w01 = jnp.einsum("ic,tco->tio", w0s, w1s)            # (3, Cin, Cout)
    shift01 = shift0 @ (w1s[0] + w1s[1] + w1s[2]) + shift1
    corr0 = shift0 @ w1s[0]                               # missing tap at global row 0
    corr2 = shift0 @ w1s[2]                               # missing tap at global row Lh-1

    cin_p = _round_up(cin, 8)
    cout_p = _round_up(cout, 128)                         # lane-dense channels
    w01p = jnp.zeros((3, cin_p, cout_p), jnp.float32).at[:, :cin, :cout].set(w01)
    w2p = jnp.zeros((3, cout_p, cout_p), jnp.float32).at[:, :cout, :cout].set(w2s)
    shifts = (jnp.zeros((4, cout_p), jnp.float32)
              .at[0, :cout].set(shift01)
              .at[1, :cout].set(shift2)
              .at[2, :cout].set(corr0)
              .at[3, :cout].set(corr2))

    return {"w01": w01p.astype(compute_dtype),
            "w2": w2p.astype(compute_dtype),
            "shifts": shifts,
            "cin": cin, "cout": cout}


# --------------------------------------------------------------------------
# Wrapper
# --------------------------------------------------------------------------
def reduction_block(x_ncl, params, *, compute_dtype=jnp.bfloat16, row_tile=1024,
                    out_dtype=jnp.float32, channels_last=False,
                    vmem_budget_bytes=40 << 20, vmem_limit_bytes=None):
    """x_ncl: (B, Cin, L) float32 (PyTorch NCL). Returns (B, Cout, Lh) by default."""
    if "w01" not in params:
        params = pack_reduction_block_params(params, compute_dtype=compute_dtype)

    B, Cin, L = x_ncl.shape
    assert Cin == params["cin"]
    Cout = params["cout"]
    _, Cin_p, Cout_p = params["w01"].shape
    cdt = params["w01"].dtype

    Lh = (L - 1) // 2 + 1                        # Conv1d(k=1, stride=2) output length
    # tile selection: ~row_tile rows/tile, equalized so Lh_pad - Lh stays small
    nt0 = max(1, _cdiv(Lh, max(16, int(row_tile))))
    T = _round_up(_cdiv(Lh, nt0), 16)
    cb = jnp.dtype(cdt).itemsize
    ob = jnp.dtype(out_dtype).itemsize
    while T > 16 and _vmem_estimate(T, Cin_p, Cout_p, cb, ob) > vmem_budget_bytes:
        T = max(16, _round_up(T // 2, 16))
    num_tiles = _cdiv(Lh, T)
    Lh_pad = num_tiles * T

    if vmem_limit_bytes is None:
        est = _vmem_estimate(T, Cin_p, Cout_p, cb, ob)
        vmem_limit_bytes = int(min(96 << 20, max(32 << 20, est * 3 // 2)))

    # NCL -> NLC, stride-2 row select, halo + channel zero padding (single pass).
    xs = jnp.transpose(x_ncl, (0, 2, 1))[:, ::2, :].astype(cdt)           # (B, Lh, Cin)
    xp = jnp.pad(xs, ((0, 0), (2, Lh_pad + 6 - Lh), (0, Cin_p - Cin)))    # (B, Lh_pad+8, Cin_p)

    kernel = functools.partial(_reduction_block_kernel, tile=T, lh=Lh, compute_dtype=cdt)
    tpb = T // 8   # 8-row blocks per tile (for the halo index map)

    out = pl.pallas_call(
        kernel,
        out_shape=jax.ShapeDtypeStruct((B, Lh_pad, Cout_p), out_dtype),
        grid=(B, num_tiles),
        in_specs=[
            # central T rows of the window (auto-pipelined)
            pl.BlockSpec((None, T, Cin_p), lambda b, j: (b, j, 0)),
            # 4-row halo (+4 unused) = first 8 rows of the next tile's block
            pl.BlockSpec((None, 8, Cin_p), lambda b, j: (b, (j + 1) * tpb, 0)),
            # constants: whole-array VMEM residents (single-buffered)
            pl.BlockSpec(memory_space=pltpu.MemorySpace.VMEM),
            pl.BlockSpec(memory_space=pltpu.MemorySpace.VMEM),
            pl.BlockSpec(memory_space=pltpu.MemorySpace.VMEM),
        ],
        out_specs=pl.BlockSpec((None, T, Cout_p), lambda b, j: (b, j, 0)),
        scratch_shapes=[
            pltpu.VMEM((T + 8, Cin_p), cdt),          # stitched input window
            pltpu.VMEM((T + 2, Cout_p), jnp.float32),  # pre-ReLU conv1 output
        ],
        compiler_params=pltpu.CompilerParams(
            dimension_semantics=("parallel", "parallel"),
            vmem_limit_bytes=int(vmem_limit_bytes)),
    )(xp, xp, params["w01"], params["w2"], params["shifts"])

    out = out[:, :Lh, :Cout]
    if channels_last:
        return out                                  # (B, Lh, Cout): skips a full output pass
    return jnp.transpose(out, (0, 2, 1))            # PyTorch NCL layout


# --------------------------- pure-JAX reference (NCL) ---------------------------
def reduction_block_ref(x, params):
    eps = 1e-5
    dn = ("NCH", "OIH", "NCH")

    def bn(h, g, b, m, v):
        g, b, m, v = (a.reshape(1, -1, 1) for a in (g, b, m, v))
        return (h - m) / jnp.sqrt(v + eps) * g + b

    h = lax.conv_general_dilated(x, params["w0"], (2,), "VALID", dimension_numbers=dn)
    h = h + params["b0"].reshape(1, -1, 1)
    h = bn(h, *params["bn0"])
    h = lax.conv_general_dilated(h, params["w1"], (1,), ((1, 1),), dimension_numbers=dn)
    h = h + params["b1"].reshape(1, -1, 1)
    h = jnp.maximum(bn(h, *params["bn1"]), 0.0)
    h = lax.conv_general_dilated(h, params["w2"], (1,), ((1, 1),), dimension_numbers=dn)
    h = h + params["b2"].reshape(1, -1, 1)
    h = jnp.maximum(bn(h, *params["bn2"]), 0.0)
    return h


if __name__ == "__main__":
    B, Cin, Cout = 2, 4, 8

    key = jax.random.PRNGKey(0)
    ks = jax.random.split(key, 12)

    def bn_params(k):
        k1, k2, k3, k4 = jax.random.split(k, 4)
        gamma = 1.0 + 0.1 * jax.random.normal(k1, (Cout,), jnp.float32)
        beta = 0.1 * jax.random.normal(k2, (Cout,), jnp.float32)
        mean = 0.1 * jax.random.normal(k3, (Cout,), jnp.float32)
        var = jnp.abs(jax.random.normal(k4, (Cout,), jnp.float32)) + 0.5
        return (gamma, beta, mean, var)

    params = {
        "w0": 0.2 * jax.random.normal(ks[0], (Cout, Cin, 1), jnp.float32),
        "b0": 0.1 * jax.random.normal(ks[1], (Cout,), jnp.float32),
        "w1": 0.2 * jax.random.normal(ks[2], (Cout, Cout, 3), jnp.float32),
        "b1": 0.1 * jax.random.normal(ks[3], (Cout,), jnp.float32),
        "w2": 0.2 * jax.random.normal(ks[4], (Cout, Cout, 3), jnp.float32),
        "b2": 0.1 * jax.random.normal(ks[5], (Cout,), jnp.float32),
        "bn0": bn_params(ks[6]),
        "bn1": bn_params(ks[7]),
        "bn2": bn_params(ks[8]),
    }

    # pack (fold BN + fuse resize_conv into conv1) once; reuse across calls
    packed_f32 = pack_reduction_block_params(params, compute_dtype=jnp.float32)
    packed_bf16 = pack_reduction_block_params(params, compute_dtype=jnp.bfloat16)

    # test 1: single L tile, f32 matmul path
    L1 = 16
    x1 = jax.random.normal(ks[9], (B, Cin, L1), jnp.float32)
    out1 = jax.block_until_ready(reduction_block(x1, packed_f32))
    ref1 = jax.block_until_ready(reduction_block_ref(x1, params))
    assert out1.shape == (B, Cout, L1 // 2), out1.shape
    assert jnp.allclose(out1, ref1, rtol=1e-3, atol=1e-3), \
        float(jnp.max(jnp.abs(out1 - ref1)))

    # test 2: 5 L tiles (L=129 -> Lh=65, T=16), exercises first/interior/last
    # tiles and the Lh % T == 1 halo corner of the edge correction.
    L2 = 129
    x2 = jax.random.normal(ks[10], (B, Cin, L2), jnp.float32)
    out2 = jax.block_until_ready(reduction_block(x2, packed_f32, row_tile=16))
    ref2 = jax.block_until_ready(reduction_block_ref(x2, params))
    assert out2.shape == (B, Cout, (L2 - 1) // 2 + 1), out2.shape
    assert jnp.allclose(out2, ref2, rtol=1e-3, atol=1e-3), \
        float(jnp.max(jnp.abs(out2 - ref2)))

    # test 3: default bf16 MXU path (fast path on v6e/v7x), loose tolerance
    out3 = jax.block_until_ready(reduction_block(x2, packed_bf16, row_tile=16))
    assert jnp.allclose(out3, ref2, rtol=5e-2, atol=5e-2), \
        float(jnp.max(jnp.abs(out3 - ref2)))

    print("KERNEL_OK")
</pallas_src>

<mosaic_0001>
module attributes {stable_mosaic.version = 11 : i64} {
  func.func @_reduction_block_kernel(%arg0: i32, %arg1: i32, %arg2: memref<1x16x8xf32, #tpu.memory_space<vmem>>, %arg3: memref<1x8x8xf32, #tpu.memory_space<vmem>>, %arg4: memref<3x8x128xf32, #tpu.memory_space<vmem>>, %arg5: memref<3x128x128xf32, #tpu.memory_space<vmem>>, %arg6: memref<4x128xf32, #tpu.memory_space<vmem>>, %arg7: memref<1x16x128xf32, #tpu.memory_space<vmem>>, %arg8: memref<24x8xf32, #tpu.memory_space<vmem>>, %arg9: memref<18x128xf32, #tpu.memory_space<vmem>>) attributes {dimension_semantics = [#tpu.dimension_semantics<parallel>, #tpu.dimension_semantics<parallel>], iteration_bounds = array<i64: 2, 1>, scalar_prefetch = 0 : i64, scratch_operands = 2 : i64, tpu.core_type = #tpu.core_type<tc>, window_params = [{transform_indices = @transform_0, window_bounds = array<i64: 1, 16, 8>}, {transform_indices = @transform_1, window_bounds = array<i64: 1, 8, 8>}, {pipeline_mode = #tpu.pipeline_mode<synchronous>, transform_indices = @transform_2, window_bounds = array<i64: 3, 8, 128>}, {pipeline_mode = #tpu.pipeline_mode<synchronous>, transform_indices = @transform_3, window_bounds = array<i64: 3, 128, 128>}, {pipeline_mode = #tpu.pipeline_mode<synchronous>, transform_indices = @transform_4, window_bounds = array<i64: 4, 128>}, {transform_indices = @transform_5, window_bounds = array<i64: 1, 16, 128>}]} {
    %c0 = arith.constant 0 : index
    %c0_0 = arith.constant 0 : index
    %c0_1 = arith.constant 0 : index
    %0 = vector.load %arg2[%c0, %c0_0, %c0_1] : memref<1x16x8xf32, #tpu.memory_space<vmem>>, vector<1x16x8xf32>
    %1 = vector.shape_cast %0 : vector<1x16x8xf32> to vector<16x8xf32>
    %c0_2 = arith.constant 0 : index
    %c0_3 = arith.constant 0 : index
    %2 = vector.load %arg8[%c0_2, %c0_3] : memref<24x8xf32, #tpu.memory_space<vmem>>, vector<16x8xf32>
    tpu.vector_store %arg8[%c0_2, %c0_3], %1 {strides = array<i32>} : memref<24x8xf32, #tpu.memory_space<vmem>>, vector<16x8xf32>,
    %c0_4 = arith.constant 0 : index
    %c0_5 = arith.constant 0 : index
    %c0_6 = arith.constant 0 : index
    %3 = vector.load %arg3[%c0_4, %c0_5, %c0_6] : memref<1x8x8xf32, #tpu.memory_space<vmem>>, vector<1x8x8xf32>
    %4 = vector.shape_cast %3 : vector<1x8x8xf32> to vector<8x8xf32>
    %c16 = arith.constant 16 : index
    %c0_7 = arith.constant 0 : index
    %5 = vector.load %arg8[%c16, %c0_7] : memref<24x8xf32, #tpu.memory_space<vmem>>, vector<8x8xf32>
    tpu.vector_store %arg8[%c16, %c0_7], %4 {strides = array<i32>} : memref<24x8xf32, #tpu.memory_space<vmem>>, vector<8x8xf32>,
    %c0_8 = arith.constant 0 : index
    %c0_9 = arith.constant 0 : index
    %6 = vector.load %arg8[%c0_8, %c0_9] : memref<24x8xf32, #tpu.memory_space<vmem>>, vector<24x8xf32>
    %7 = vector.extract_strided_slice %6 {offsets = [0, 0], sizes = [18, 8], strides = [1, 1]} : vector<24x8xf32> to vector<18x8xf32>
    %c0_10 = arith.constant 0 : index
    %c0_11 = arith.constant 0 : index
    %c0_12 = arith.constant 0 : index
    %8 = vector.load %arg4[%c0_10, %c0_11, %c0_12] : memref<3x8x128xf32, #tpu.memory_space<vmem>>, vector<1x8x128xf32>
    %9 = vector.shape_cast %8 : vector<1x8x128xf32> to vector<8x128xf32>
    %cst = arith.constant dense<0.000000e+00> : vector<18x128xf32>
    %10 = tpu.matmul %7, %9, %cst {dimension_numbers = #tpu.dot_dimension_numbers<[1], [0], [0], [1], [0, 0, 1, 1], [], []>} : vector<18x8xf32>, vector<8x128xf32>, vector<18x128xf32> -> vector<18x128xf32>
    %11 = vector.extract_strided_slice %6 {offsets = [1, 0], sizes = [18, 8], strides = [1, 1]} : vector<24x8xf32> to vector<18x8xf32>
    %c1 = arith.constant 1 : index
    %c0_13 = arith.constant 0 : index
    %c0_14 = arith.constant 0 : index
    %12 = vector.load %arg4[%c1, %c0_13, %c0_14] : memref<3x8x128xf32, #tpu.memory_space<vmem>>, vector<1x8x128xf32>
    %13 = vector.shape_cast %12 : vector<1x8x128xf32> to vector<8x128xf32>
    %cst_15 = arith.constant dense<0.000000e+00> : vector<18x128xf32>
    %14 = tpu.matmul %11, %13, %cst_15 {dimension_numbers = #tpu.dot_dimension_numbers<[1], [0], [0], [1], [0, 0, 1, 1], [], []>} : vector<18x8xf32>, vector<8x128xf32>, vector<18x128xf32> -> vector<18x128xf32>
    %15 = arith.addf %10, %14 : vector<18x128xf32>
    %16 = vector.extract_strided_slice %6 {offsets = [2, 0], sizes = [18, 8], strides = [1, 1]} : vector<24x8xf32> to vector<18x8xf32>
    %c2 = arith.constant 2 : index
    %c0_16 = arith.constant 0 : index
    %c0_17 = arith.constant 0 : index
    %17 = vector.load %arg4[%c2, %c0_16, %c0_17] : memref<3x8x128xf32, #tpu.memory_space<vmem>>, vector<1x8x128xf32>
    %18 = vector.shape_cast %17 : vector<1x8x128xf32> to vector<8x128xf32>
    %cst_18 = arith.constant dense<0.000000e+00> : vector<18x128xf32>
    %19 = tpu.matmul %16, %18, %cst_18 {dimension_numbers = #tpu.dot_dimension_numbers<[1], [0], [0], [1], [0, 0, 1, 1], [], []>} : vector<18x8xf32>, vector<8x128xf32>, vector<18x128xf32> -> vector<18x128xf32>
    %20 = arith.addf %15, %19 : vector<18x128xf32>
    %c0_19 = arith.constant 0 : index
    %c0_20 = arith.constant 0 : index
    %21 = vector.load %arg6[%c0_19, %c0_20] : memref<4x128xf32, #tpu.memory_space<vmem>>, vector<1x128xf32>
    %22 = vector.broadcast %21 : vector<1x128xf32> to vector<18x128xf32>
    %23 = arith.addf %20, %22 : vector<18x128xf32>
    %c0_21 = arith.constant 0 : index
    %c0_22 = arith.constant 0 : index
    %24 = vector.load %arg9[%c0_21, %c0_22] : memref<18x128xf32, #tpu.memory_space<vmem>>, vector<18x128xf32>
    tpu.vector_store %arg9[%c0_21, %c0_22], %23 {strides = array<i32>} : memref<18x128xf32, #tpu.memory_space<vmem>>, vector<18x128xf32>,
    %c0_i32 = arith.constant 0 : i32
    %25 = arith.cmpi eq, %arg1, %c0_i32 : i32
    %26 = arith.extui %25 : i1 to i32
    %c0_i32_23 = arith.constant 0 : i32
    %27 = arith.cmpi ne, %26, %c0_i32_23 : i32
    scf.if %27 {
      %cst_49 = arith.constant 0.000000e+00 : f32
      %63 = vector.broadcast %cst_49 : f32 to vector<1x128xf32>
      %c0_50 = arith.constant 0 : index
      %c0_51 = arith.constant 0 : index
      %64 = vector.load %arg9[%c0_50, %c0_51] : memref<18x128xf32, #tpu.memory_space<vmem>>, vector<1x128xf32>
      tpu.vector_store %arg9[%c0_50, %c0_51], %63 {strides = array<i32>} : memref<18x128xf32, #tpu.memory_space<vmem>>, vector<1x128xf32>,
      %c1_52 = arith.constant 1 : index
      %c0_53 = arith.constant 0 : index
      %65 = vector.load %arg9[%c1_52, %c0_53] : memref<18x128xf32, #tpu.memory_space<vmem>>, vector<1x128xf32>
      %c2_54 = arith.constant 2 : index
      %c0_55 = arith.constant 0 : index
      %66 = vector.load %arg6[%c2_54, %c0_55] : memref<4x128xf32, #tpu.memory_space<vmem>>, vector<1x128xf32>
      %67 = arith.subf %65, %66 : vector<1x128xf32>
      %c1_56 = arith.constant 1 : index
      %c0_57 = arith.constant 0 : index
      %68 = vector.load %arg9[%c1_56, %c0_57] : memref<18x128xf32, #tpu.memory_space<vmem>>, vector<1x128xf32>
      tpu.vector_store %arg9[%c1_56, %c0_57], %67 {strides = array<i32>} : memref<18x128xf32, #tpu.memory_space<vmem>>, vector<1x128xf32>,
    } else {
    }
    %c16_i32 = arith.constant 16 : i32
    %28 = arith.muli %arg1, %c16_i32 : i32
    %c8_i32 = arith.constant 8 : i32
    %29 = arith.subi %c8_i32, %28 : i32
    %c0_i32_24 = arith.constant 0 : i32
    %30 = arith.cmpi sge, %29, %c0_i32_24 : i32
    %c17_i32 = arith.constant 17 : i32
    %31 = arith.cmpi sle, %29, %c17_i32 : i32
    %32 = arith.andi %30, %31 : i1
    %33 = arith.extui %32 : i1 to i32
    %c0_i32_25 = arith.constant 0 : i32
    %34 = arith.cmpi ne, %33, %c0_i32_25 : i32
    scf.if %34 {
      %63 = tpu.iota {dimensions = array<i32: 0>} : vector<18x1xi32>
      %c0_49 = arith.constant 0 : index
      %c0_50 = arith.constant 0 : index
      %64 = vector.load %arg9[%c0_49, %c0_50] : memref<18x128xf32, #tpu.memory_space<vmem>>, vector<18x128xf32>
      %65 = vector.broadcast %29 : i32 to vector<18x1xi32>
      %66 = arith.cmpi eq, %63, %65 : vector<18x1xi32>
      %cst_51 = arith.constant 1.000000e+00 : f32
      %cst_52 = arith.constant 0.000000e+00 : f32
      %67 = vector.broadcast %cst_51 : f32 to vector<18x1xf32>
      %68 = vector.broadcast %cst_52 : f32 to vector<18x1xf32>
      %69 = arith.select %66, %67, %68 : vector<18x1xi1>, vector<18x1xf32>
      %c3 = arith.constant 3 : index
      %c0_53 = arith.constant 0 : index
      %70 = vector.load %arg6[%c3, %c0_53] : memref<4x128xf32, #tpu.memory_space<vmem>>, vector<1x128xf32>
      %71 = vector.broadcast %69 : vector<18x1xf32> to vector<18x128xf32>
      %72 = vector.broadcast %70 : vector<1x128xf32> to vector<18x128xf32>
      %73 = arith.mulf %71, %72 : vector<18x128xf32>
      %74 = arith.subf %64, %73 : vector<18x128xf32>
      %c0_54 = arith.constant 0 : index
      %c0_55 = arith.constant 0 : index
      %75 = vector.load %arg9[%c0_54, %c0_55] : memref<18x128xf32, #tpu.memory_space<vmem>>, vector<18x128xf32>
      tpu.vector_store %arg9[%c0_54, %c0_55], %74 {strides = array<i32>} : memref<18x128xf32, #tpu.memory_space<vmem>>, vector<18x128xf32>,
    } else {
    }
    %c0_i32_26 = arith.constant 0 : i32
    %35 = arith.cmpi eq, %arg1, %c0_i32_26 : i32
    %36 = arith.extui %35 : i1 to i32
    %c0_i32_27 = arith.constant 0 : i32
    %37 = arith.cmpi ne, %36, %c0_i32_27 : i32
    scf.if %37 {
      %63 = tpu.iota {dimensions = array<i32: 0>} : vector<18x1xi32>
      %64 = vector.broadcast %29 : i32 to vector<18x1xi32>
      %65 = arith.cmpi sgt, %63, %64 : vector<18x1xi32>
      %c0_49 = arith.constant 0 : index
      %c0_50 = arith.constant 0 : index
      %66 = vector.load %arg9[%c0_49, %c0_50] : memref<18x128xf32, #tpu.memory_space<vmem>>, vector<18x128xf32>
      %cst_51 = arith.constant 0.000000e+00 : f32
      %67 = vector.shape_cast %65 : vector<18x1xi1> to vector<18x1xi1>
      %68 = vector.broadcast %67 : vector<18x1xi1> to vector<18x128xi1>
      %69 = vector.broadcast %cst_51 : f32 to vector<18x128xf32>
      %70 = arith.select %68, %69, %66 : vector<18x128xi1>, vector<18x128xf32>
      %c0_52 = arith.constant 0 : index
      %c0_53 = arith.constant 0 : index
      %71 = vector.load %arg9[%c0_52, %c0_53] : memref<18x128xf32, #tpu.memory_space<vmem>>, vector<18x128xf32>
      tpu.vector_store %arg9[%c0_52, %c0_53], %70 {strides = array<i32>} : memref<18x128xf32, #tpu.memory_space<vmem>>, vector<18x128xf32>,
    } else {
    }
    %c0_28 = arith.constant 0 : index
    %c0_29 = arith.constant 0 : index
    %38 = vector.load %arg9[%c0_28, %c0_29] : memref<18x128xf32, #tpu.memory_space<vmem>>, vector<18x128xf32>
    %cst_30 = arith.constant 0.000000e+00 : f32
    %39 = vector.broadcast %cst_30 : f32 to vector<18x128xf32>
    %40 = arith.maximumf %38, %39 : vector<18x128xf32>
    %41 = vector.extract_strided_slice %40 {offsets = [0, 0], sizes = [16, 128], strides = [1, 1]} : vector<18x128xf32> to vector<16x128xf32>
    %c0_31 = arith.constant 0 : index
    %c0_32 = arith.constant 0 : index
    %c0_33 = arith.constant 0 : index
    %42 = vector.load %arg5[%c0_31, %c0_32, %c0_33] : memref<3x128x128xf32, #tpu.memory_space<vmem>>, vector<1x128x128xf32>
    %43 = vector.shape_cast %42 : vector<1x128x128xf32> to vector<128x128xf32>
    %cst_34 = arith.constant dense<0.000000e+00> : vector<16x128xf32>
    %44 = tpu.matmul %41, %43, %cst_34 {dimension_numbers = #tpu.dot_dimension_numbers<[1], [0], [0], [1], [0, 0, 1, 1], [], []>} : vector<16x128xf32>, vector<128x128xf32>, vector<16x128xf32> -> vector<16x128xf32>
    %45 = vector.extract_strided_slice %40 {offsets = [1, 0], sizes = [16, 128], strides = [1, 1]} : vector<18x128xf32> to vector<16x128xf32>
    %c1_35 = arith.constant 1 : index
    %c0_36 = arith.constant 0 : index
    %c0_37 = arith.constant 0 : index
    %46 = vector.load %arg5[%c1_35, %c0_36, %c0_37] : memref<3x128x128xf32, #tpu.memory_space<vmem>>, vector<1x128x128xf32>
    %47 = vector.shape_cast %46 : vector<1x128x128xf32> to vector<128x128xf32>
    %cst_38 = arith.constant dense<0.000000e+00> : vector<16x128xf32>
    %48 = tpu.matmul %45, %47, %cst_38 {dimension_numbers = #tpu.dot_dimension_numbers<[1], [0], [0], [1], [0, 0, 1, 1], [], []>} : vector<16x128xf32>, vector<128x128xf32>, vector<16x128xf32> -> vector<16x128xf32>
    %49 = arith.addf %44, %48 : vector<16x128xf32>
    %50 = vector.extract_strided_slice %40 {offsets = [2, 0], sizes = [16, 128], strides = [1, 1]} : vector<18x128xf32> to vector<16x128xf32>
    %c2_39 = arith.constant 2 : index
    %c0_40 = arith.constant 0 : index
    %c0_41 = arith.constant 0 : index
    %51 = vector.load %arg5[%c2_39, %c0_40, %c0_41] : memref<3x128x128xf32, #tpu.memory_space<vmem>>, vector<1x128x128xf32>
    %52 = vector.shape_cast %51 : vector<1x128x128xf32> to vector<128x128xf32>
    %cst_42 = arith.constant dense<0.000000e+00> : vector<16x128xf32>
    %53 = tpu.matmul %50, %52, %cst_42 {dimension_numbers = #tpu.dot_dimension_numbers<[1], [0], [0], [1], [0, 0, 1, 1], [], []>} : vector<16x128xf32>, vector<128x128xf32>, vector<16x128xf32> -> vector<16x128xf32>
    %54 = arith.addf %49, %53 : vector<16x128xf32>
    %c1_43 = arith.constant 1 : index
    %c0_44 = arith.constant 0 : index
    %55 = vector.load %arg6[%c1_43, %c0_44] : memref<4x128xf32, #tpu.memory_space<vmem>>, vector<1x128xf32>
    %56 = vector.broadcast %55 : vector<1x128xf32> to vector<16x128xf32>
    %57 = arith.addf %54, %56 : vector<16x128xf32>
    %cst_45 = arith.constant 0.000000e+00 : f32
    %58 = vector.broadcast %cst_45 : f32 to vector<16x128xf32>
    %59 = arith.maximumf %57, %58 : vector<16x128xf32>
    %c0_46 = arith.constant 0 : index
    %c0_47 = arith.constant 0 : index
    %c0_48 = arith.constant 0 : index
    %60 = vector.load %arg7[%c0_46, %c0_47, %c0_48] : memref<1x16x128xf32, #tpu.memory_space<vmem>>, vector<1x16x128xf32>
    %61 = vector.shape_cast %60 : vector<1x16x128xf32> to vector<16x128xf32>
    %62 = vector.shape_cast %59 : vector<16x128xf32> to vector<1x16x128xf32>
    tpu.vector_store %arg7[%c0_46, %c0_47, %c0_48], %62 {strides = array<i32>} : memref<1x16x128xf32, #tpu.memory_space<vmem>>, vector<1x16x128xf32>,
    return
  }
  func.func @transform_0(%arg0: i32, %arg1: i32) -> (i32, i32, i32) {
    %c0_i32 = arith.constant 0 : i32
    %c0_i32_0 = arith.constant 0 : i32
    return %arg0, %arg1, %c0_i32 : i32, i32, i32
  }
  func.func @transform_1(%arg0: i32, %arg1: i32) -> (i32, i32, i32) {
    %c1_i32 = arith.constant 1 : i32
    %0 = arith.addi %arg1, %c1_i32 : i32
    %c2_i32 = arith.constant 2 : i32
    %1 = arith.muli %0, %c2_i32 : i32
    %c0_i32 = arith.constant 0 : i32
    %c0_i32_0 = arith.constant 0 : i32
    return %arg0, %1, %c0_i32 : i32, i32, i32
  }
  func.func @transform_2(%arg0: i32, %arg1: i32) -> (i32, i32, i32) {
    %c0_i32 = arith.constant 0 : i32
    %c0_i32_0 = arith.constant 0 : i32
    %c0_i32_1 = arith.constant 0 : i32
    %c0_i32_2 = arith.constant 0 : i32
    return %c0_i32, %c0_i32_0, %c0_i32_1 : i32, i32, i32
  }
  func.func @transform_3(%arg0: i32, %arg1: i32) -> (i32, i32, i32) {
    %c0_i32 = arith.constant 0 : i32
    %c0_i32_0 = arith.constant 0 : i32
    %c0_i32_1 = arith.constant 0 : i32
    %c0_i32_2 = arith.constant 0 : i32
    return %c0_i32, %c0_i32_0, %c0_i32_1 : i32, i32, i32
  }
  func.func @transform_4(%arg0: i32, %arg1: i32) -> (i32, i32) {
    %c0_i32 = arith.constant 0 : i32
    %c0_i32_0 = arith.constant 0 : i32
    %c0_i32_1 = arith.constant 0 : i32
    return %c0_i32, %c0_i32_0 : i32, i32
  }
  func.func @transform_5(%arg0: i32, %arg1: i32) -> (i32, i32, i32) {
    %c0_i32 = arith.constant 0 : i32
    %c0_i32_0 = arith.constant 0 : i32
    return %arg0, %arg1, %c0_i32 : i32, i32, i32
  }
}

</mosaic_0001>

<llo_original>
// kernel: tpu_custom_call.1
$region0: #{tpu_custom_call.1}
  #allocation0 [shape = 'u32[]', space=smem, size = 0x4, offset = 0x4, fixed_abs, tag = 'smem constant byte address 0x4 - core index']
  #allocation1 [shape = 'u32[144,128]{1,0:T(1,128)}', space=vmem, size = 0x12000, scoped, tag = 'internal scratch']
  #allocation2 [shape = 'f32[24,8]{1,0:T(8,128)}', space=vmem, size = 0x3000, scoped, tag = 'scratch operand']
  #allocation3 [shape = 'f32[18,128]{1,0:T(8,128)}', space=vmem, size = 0x3000, scoped, tag = 'scratch operand']
  %s0 = inlined_call_operand.vmem [shape: f32[2,24,8], index: 0, kind: input, shape index: {}]
  %s1 = inlined_call_operand.vmem [shape: f32[2,24,8], index: 1, kind: input, shape index: {}]
  %s2 = inlined_call_operand.vmem [shape: f32[3,8,128], index: 2, kind: input, shape index: {}]
  %s3 = inlined_call_operand.hbm [shape: f32[3,128,128], index: 3, kind: input, shape index: {}]
  %s4 = inlined_call_operand.vmem [shape: f32[4,128], index: 4, kind: input, shape index: {}]
  %s5 = inlined_call_operand.hbm [shape: f32[2,16,128], index: 5, kind: output, shape index: {}]
  %s6 = sld [smem:[#allocation0]]
  $region69: #{tpu_custom_call.1} parent=0
    _
  %s8 = ssub.s32 1, %s6
  %s9 = scalar_select 0, %s8, %s6
  $region1: #{tpu_custom_call.1} parent=0
    #allocation4 [shape = 'u8[196608]{0}', space=vmem, size = 0x30000, scoped, tag = 'input window, operand 3, single buffered']
    #allocation5 [shape = 's32[2]{0}', space=sflag, size = 0x8, scoped, tag = 'scoped memory for tpu_custom_call.1']
    #allocation6 [shape = 's32[2]{0}', space=sflag, size = 0x8, scoped, tag = 'scoped memory for tpu_custom_call.1']
    #allocation7 [shape = 'u8[16384]{0}', space=vmem, size = 0x4000, scoped, tag = 'output window, operand 0']
    %10 = vsyncpa [#allocation5], 0
    %11 = vsyncpa [#allocation6], 0
    %s12 = scalar_lea.sflag [#allocation6], 1
    %13 = vsyncpa %s12, 0
    loop: start=0, step=1, limit=4
    $region2: #{tpu_custom_call.1} parent=1 // loop_pre_header
      _
    $region3: #{tpu_custom_call.1} parent=1 // loop_header
      %s15 = sphi 0, %s19
      %p16 = scmp.ge.s32.totalorder %s15, 4
      %s22 = sphi 0, %s34
      %s23 = sphi 0, %s30
      %s24 = sphi 0, %s22
      %s25 = sphi 0, %s23
      %s26 = sphi 0, %s24
      %s27 = sphi 0, %s25
      %s39 = sphi 0, %s41
      %s42 = sphi 0, %s39
      %s43 = sphi 0, %s42
      %s59 = sphi 0, %s43
      %s71 = sphi 0, %s73
      %s74 = sphi 0, %s71
      %s75 = sphi 0, %s74
      %s91 = sphi 0, %s75
      %s95 = sphi 0, %s95
      %s97 = sphi 0, %s95
      %s98 = sphi 0, %s97
      %s112 = sphi 0, %s98
      %s116 = sphi 0, %s116
      %s118 = sphi 0, %s116
      %s119 = sphi 0, %s118
      %s133 = sphi 0, %s119
      %s137 = sphi 0, %s137
      %s139 = sphi 0, %s137
      %s140 = sphi 0, %s139
      %s154 = sphi 0, %s140
      %s162 = sphi 0, %s164
      %s165 = sphi 0, %s162
      %s166 = sphi 0, %s165
      %s182 = sphi 0, %s166
    $region4: #{tpu_custom_call.1} parent=1 // loop_header_branch
      %18 = sbr.rel (%p16) target = $region8
    $region5: #{tpu_custom_call.1} parent=1 // loop_body
      %s20 = ssub.s32 %s15, 1
      %s21 = ssub.s32 %s15, 2
      %s28 = sadd.s32 1, %s23
      %p29 = scmp.ge.s32.totalorder %s28, 1
      %s30 = scalar_select %p29, 0, %s28
      %s31 = sadd.s32 1, %s22
      %s32 = scalar_select %p29, %s31, %s22
      %p33 = scmp.ge.s32.totalorder %s32, 2
      %s34 = scalar_select %p33, 0, %s32
      %s35 = ssub.s32 %s22, %s34
      %s36 = ssub.s32 %s23, %s30
      %s37 = sor.u32 %s35, %s36
      %p38 = scmp.eq.s32.totalorder %s37, 0
      %s40 = sadd.s32 %s39, 1
      %s41 = scalar_select %p38, %s39, %s40
      %p44 = pneg %p38
      %p45 = scmp.eq.s32.totalorder %s15, 1
      %p46 = por %p44, %p45
      %p47 = scmp.ne.s32.totalorder %s39, %s42
      %p48 = scmp.eq.s32.totalorder %s15, 0
      %p49 = por %p47, %p48
      %p50 = scmp.ne.s32.totalorder %s39, %s42
      %p51 = scmp.eq.s32.totalorder %s20, 1
      %p52 = por %p50, %p51
      %p53 = scmp.ne.s32.totalorder %s42, %s43
      %p54 = scmp.eq.s32.totalorder %s20, 0
      %p55 = por %p53, %p54
      %p56 = scmp.ne.s32.totalorder %s42, %s43
      %p57 = scmp.eq.s32.totalorder %s21, 1
      %p58 = por %p56, %p57
      %p60 = scmp.ne.s32.totalorder %s43, %s59
      %p61 = scmp.eq.s32.totalorder %s21, 0
      %p62 = por %p60, %p61
      %s63 = sadd.s32 %s23, 1
      %s64 = smul.u32 %s63, 2
      %s65 = sadd.s32 %s30, 1
      %s66 = smul.u32 %s65, 2
      %s67 = ssub.s32 %s22, %s34
      %s68 = ssub.s32 %s64, %s66
      %s69 = sor.u32 %s67, %s68
      %p70 = scmp.eq.s32.totalorder %s69, 0
      %s72 = sadd.s32 %s71, 1
      %s73 = scalar_select %p70, %s71, %s72
      %p76 = pneg %p70
      %p77 = scmp.eq.s32.totalorder %s15, 1
      %p78 = por %p76, %p77
      %p79 = scmp.ne.s32.totalorder %s71, %s74
      %p80 = scmp.eq.s32.totalorder %s15, 0
      %p81 = por %p79, %p80
      %p82 = scmp.ne.s32.totalorder %s71, %s74
      %p83 = scmp.eq.s32.totalorder %s20, 1
      %p84 = por %p82, %p83
      %p85 = scmp.ne.s32.totalorder %s74, %s75
      %p86 = scmp.eq.s32.totalorder %s20, 0
      %p87 = por %p85, %p86
      %p88 = scmp.ne.s32.totalorder %s74, %s75
      %p89 = scmp.eq.s32.totalorder %s21, 1
      %p90 = por %p88, %p89
      %p92 = scmp.ne.s32.totalorder %s75, %s91
      %p93 = scmp.eq.s32.totalorder %s21, 0
      %p94 = por %p92, %p93
      %s96 = sadd.s32 %s95, 1
      %p99 = scmp.eq.s32.totalorder %s15, 1
      %p100 = scmp.ne.s32.totalorder %s95, %s97
      %p101 = scmp.eq.s32.totalorder %s15, 0
      %p102 = por %p100, %p101
      %p103 = scmp.ne.s32.totalorder %s95, %s97
      %p104 = scmp.eq.s32.totalorder %s20, 1
      %p105 = por %p103, %p104
      %p106 = scmp.ne.s32.totalorder %s97, %s98
      %p107 = scmp.eq.s32.totalorder %s20, 0
      %p108 = por %p106, %p107
      %p109 = scmp.ne.s32.totalorder %s97, %s98
      %p110 = scmp.eq.s32.totalorder %s21, 1
      %p111 = por %p109, %p110
      %p113 = scmp.ne.s32.totalorder %s98, %s112
      %p114 = scmp.eq.s32.totalorder %s21, 0
      %p115 = por %p113, %p114
      %s117 = sadd.s32 %s116, 1
      %p120 = scmp.eq.s32.totalorder %s15, 1
      %p121 = scmp.ne.s32.totalorder %s116, %s118
      %p122 = scmp.eq.s32.totalorder %s15, 0
      %p123 = por %p121, %p122
      %p124 = scmp.ne.s32.totalorder %s116, %s118
      %p125 = scmp.eq.s32.totalorder %s20, 1
      %p126 = por %p124, %p125
      %p127 = scmp.ne.s32.totalorder %s118, %s119
      %p128 = scmp.eq.s32.totalorder %s20, 0
      %p129 = por %p127, %p128
      %p130 = scmp.ne.s32.totalorder %s118, %s119
      %p131 = scmp.eq.s32.totalorder %s21, 1
      %p132 = por %p130, %p131
      %p134 = scmp.ne.s32.totalorder %s119, %s133
      %p135 = scmp.eq.s32.totalorder %s21, 0
      %p136 = por %p134, %p135
      %s138 = sadd.s32 %s137, 1
      %p141 = scmp.eq.s32.totalorder %s15, 1
      %p142 = scmp.ne.s32.totalorder %s137, %s139
      %p143 = scmp.eq.s32.totalorder %s15, 0
      %p144 = por %p142, %p143
      %p145 = scmp.ne.s32.totalorder %s137, %s139
      %p146 = scmp.eq.s32.totalorder %s20, 1
      %p147 = por %p145, %p146
      %p148 = scmp.ne.s32.totalorder %s139, %s140
      %p149 = scmp.eq.s32.totalorder %s20, 0
      %p150 = por %p148, %p149
      %p151 = scmp.ne.s32.totalorder %s139, %s140
      %p152 = scmp.eq.s32.totalorder %s21, 1
      %p153 = por %p151, %p152
      %p155 = scmp.ne.s32.totalorder %s140, %s154
      %p156 = scmp.eq.s32.totalorder %s21, 0
      %p157 = por %p155, %p156
      %s158 = ssub.s32 %s22, %s34
      %s159 = ssub.s32 %s23, %s30
      %s160 = sor.u32 %s158, %s159
      %p161 = scmp.eq.s32.totalorder %s160, 0
      %s163 = sadd.s32 %s162, 1
      %s164 = scalar_select %p161, %s162, %s163
      %p167 = pneg %p161
      %p168 = scmp.eq.s32.totalorder %s15, 1
      %p169 = por %p167, %p168
      %p170 = scmp.ne.s32.totalorder %s162, %s165
      %p171 = scmp.eq.s32.totalorder %s15, 0
      %p172 = por %p170, %p171
      %p173 = scmp.ne.s32.totalorder %s162, %s165
      %p174 = scmp.eq.s32.totalorder %s20, 1
      %p175 = por %p173, %p174
      %p176 = scmp.ne.s32.totalorder %s165, %s166
      %p177 = scmp.eq.s32.totalorder %s20, 0
      %p178 = por %p176, %p177
      %p179 = scmp.ne.s32.totalorder %s165, %s166
      %p180 = scmp.eq.s32.totalorder %s21, 1
      %p181 = por %p179, %p180
      %p183 = scmp.ne.s32.totalorder %s166, %s182
      %p184 = scmp.eq.s32.totalorder %s21, 0
      %p185 = por %p183, %p184
      %p186 = scmp.le.s32.totalorder 1, %s15
      %p187 = scmp.lt.s32.totalorder %s15, 3
      %p188 = pnand %p186, %p187
      %p189 = pneg %p188
      // Predicated region
      $region9: #{tpu_custom_call.1} parent=5 // pred_check
        _
      $region10: #{tpu_custom_call.1} parent=5 // pred_check_branch
        %191 = sbr.rel (%p188) target = $region12
      $region11: #{tpu_custom_call.1} parent=5 // pred_region
        %s192 = ssub.s32 %s15, 1
        // Predicated region
        $region13: #{tpu_custom_call.1} parent=11 // pred_check
          %p193 = pneg %p108
        $region14: #{tpu_custom_call.1} parent=11 // pred_check_branch
          %195 = sbr.rel (%p193) target = $region16
        $region15: #{tpu_custom_call.1} parent=11 // pred_region
          _
        $region16: #{tpu_custom_call.1} parent=11 // pred_fallthru
          _
        // Predicated region
        $region17: #{tpu_custom_call.1} parent=11 // pred_check
          %p196 = pneg %p129
        $region18: #{tpu_custom_call.1} parent=11 // pred_check_branch
          %198 = sbr.rel (%p196) target = $region20
        $region19: #{tpu_custom_call.1} parent=11 // pred_region
          %s200 = ssub.s32 6144, 6144
          %201 = vsyncadd [#allocation5], %s200
          %s202 = sshll.u32 [#allocation4], 4
          %s203 = int_to_ptr.vmem [resolvable:$true] %s202
          %208 = dma.hbm_to_vmem [thread:$0]  %s3, 6144, %s203, [#allocation5], 128, 128, 8
        $region20: #{tpu_custom_call.1} parent=11 // pred_fallthru
          _
        // Predicated region
        $region21: #{tpu_custom_call.1} parent=11 // pred_check
          %p209 = pneg %p150
        $region22: #{tpu_custom_call.1} parent=11 // pred_check_branch
          %211 = sbr.rel (%p209) target = $region24
        $region23: #{tpu_custom_call.1} parent=11 // pred_region
          _
        $region24: #{tpu_custom_call.1} parent=11 // pred_fallthru
          _
      $region12: #{tpu_custom_call.1} parent=5 // pred_fallthru
        _
      %p212 = scmp.lt.s32.totalorder %s15, 2
      // Predicated region
      $region25: #{tpu_custom_call.1} parent=5 // pred_check
        %p213 = pneg %p212
      $region26: #{tpu_custom_call.1} parent=5 // pred_check_branch
        %215 = sbr.rel (%p213) target = $region28
      $region27: #{tpu_custom_call.1} parent=5 // pred_region
        // Predicated region
        $region29: #{tpu_custom_call.1} parent=27 // pred_check
          %p216 = pneg %p49
        $region30: #{tpu_custom_call.1} parent=27 // pred_check_branch
          %218 = sbr.rel (%p216) target = $region32
        $region31: #{tpu_custom_call.1} parent=27 // pred_region
          %s219 = smul.u32 2, %s23
          %s220 = ssub.s32 3, %s219
          %p221 = scmp.lt.s32.totalorder %s220, 2
          %s222 = scalar_select %p221, %s220, 2
          %s223 = smul.u32 128, %s222
          %p224 = scmp.lt.s32.totalorder %s22, 1
          %s225 = scalar_select %p224, %s22, 1
          %p226 = scmp.lt.s32.totalorder %s219, 2
          %s227 = scalar_select %p226, %s219, 2
          %s228 = smul.addr %s225, 3
          %s229 = sadd.s32 %s227, %s228
          %s230 = smul.addr %s229, 8
          %s231 = scalar_lea.vmem %s0, %s230
          %s232 = smul.u32 2, %s23
          %s233 = ssub.s32 3, %s232
          %p234 = scmp.lt.s32.totalorder %s233, 2
          %s235 = scalar_select %p234, %s233, 2
          %s236 = smul.u32 128, %s235
        $region32: #{tpu_custom_call.1} parent=27 // pred_fallthru
          _
        // Predicated region
        $region33: #{tpu_custom_call.1} parent=27 // pred_check
          %p237 = pneg %p81
        $region34: #{tpu_custom_call.1} parent=27 // pred_check_branch
          %239 = sbr.rel (%p237) target = $region36
        $region35: #{tpu_custom_call.1} parent=27 // pred_region
          %s240 = sadd.s32 %s23, 1
          %s241 = smul.u32 %s240, 2
          %p242 = scmp.lt.s32.totalorder %s22, 1
          %s243 = scalar_select %p242, %s22, 1
          %p244 = scmp.lt.s32.totalorder %s241, 2
          %s245 = scalar_select %p244, %s241, 2
          %s246 = smul.addr %s243, 3
          %s247 = sadd.s32 %s245, %s246
          %s248 = smul.addr %s247, 8
          %s249 = scalar_lea.vmem %s1, %s248
          %s250 = sadd.s32 %s23, 1
          %s251 = smul.u32 %s250, 2
        $region36: #{tpu_custom_call.1} parent=27 // pred_fallthru
          _
      $region28: #{tpu_custom_call.1} parent=5 // pred_fallthru
        _
      %p252 = scmp.le.s32.totalorder 1, %s15
      %p253 = scmp.lt.s32.totalorder %s15, 3
      %p254 = pnand %p252, %p253
      %p255 = pneg %p254
      // Predicated region
      $region37: #{tpu_custom_call.1} parent=5 // pred_check
        _
      $region38: #{tpu_custom_call.1} parent=5 // pred_check_branch
        %257 = sbr.rel (%p254) target = $region40
      $region39: #{tpu_custom_call.1} parent=5 // pred_region
        %s258 = ssub.s32 %s15, 1
        // Predicated region
        $region41: #{tpu_custom_call.1} parent=39 // pred_check
          %p259 = pneg %p129
        $region42: #{tpu_custom_call.1} parent=39 // pred_check_branch
          %261 = sbr.rel (%p259) target = $region44
        $region43: #{tpu_custom_call.1} parent=39 // pred_region
          %262 = dma.done [#allocation5], 6144
        $region44: #{tpu_custom_call.1} parent=39 // pred_fallthru
          _
        %s263 = smul.u32 2, %s25
        %s264 = ssub.s32 3, %s263
        %p265 = scmp.lt.s32.totalorder %s264, 2
        %s266 = scalar_select %p265, %s264, 2
        %s267 = smul.u32 128, %s266
        %p268 = scmp.lt.s32.totalorder %s24, 1
        %s269 = scalar_select %p268, %s24, 1
        %p270 = scmp.lt.s32.totalorder %s263, 2
        %s271 = scalar_select %p270, %s263, 2
        %s272 = smul.addr %s269, 3
        %s273 = sadd.s32 %s271, %s272
        %s274 = smul.addr %s273, 8
        %s275 = scalar_lea.vmem %s0, %s274
        %p276 = pneg %p55
        %p277 = pneg %p52
        %s278 = sadd.s32 %s25, 1
        %s279 = smul.u32 %s278, 2
        %p280 = scmp.lt.s32.totalorder %s24, 1
        %s281 = scalar_select %p280, %s24, 1
        %p282 = scmp.lt.s32.totalorder %s279, 2
        %s283 = scalar_select %p282, %s279, 2
        %s284 = smul.addr %s281, 3
        %s285 = sadd.s32 %s283, %s284
        %s286 = smul.addr %s285, 8
        %s287 = scalar_lea.vmem %s1, %s286
        %p288 = pneg %p87
        %p289 = pneg %p84
        %p290 = pneg %p108
        %p291 = pneg %p105
        %p292 = pneg %p129
        %p293 = pneg %p126
        %p294 = pneg %p150
        %p295 = pneg %p147
        %p296 = pneg %p178
        %p297 = pneg %p175
        %s298 = sand.u32 %s165, 1
        %s299 = scalar_lea.sflag [#allocation6], %s298
        %s300 = sand.u32 %s165, 1
        %s301 = smul.addr %s300, 16
        %s302 = scalar_lea.vmem [#allocation7], %s301
        %s303 = smul.u32 2, %s25
        %s304 = ssub.s32 3, %s303
        %p305 = scmp.lt.s32.totalorder %s304, 2
        %s306 = scalar_select %p305, %s304, 2
        %s307 = smul.u32 128, %s306
        %p308 = scmp.lt.s32.totalorder %s24, 1
        %s309 = scalar_select %p308, %s24, 1
        %p310 = scmp.lt.s32.totalorder %s303, 2
        %s311 = scalar_select %p310, %s303, 2
        %s312 = smul.addr %s309, 3
        %s313 = sadd.s32 %s311, %s312
        %s314 = smul.addr %s313, 8
        %s315 = scalar_lea.vmem %s0, %s314
        %s316 = smul.u32 2, %s25
        %s317 = ssub.s32 3, %s316
        %p318 = scmp.lt.s32.totalorder %s317, 2
        %s319 = scalar_select %p318, %s317, 2
        %s320 = smul.u32 128, %s319
        %s321 = sadd.s32 %s25, 1
        %s322 = smul.u32 %s321, 2
        %p323 = scmp.lt.s32.totalorder %s24, 1
        %s324 = scalar_select %p323, %s24, 1
        %p325 = scmp.lt.s32.totalorder %s322, 2
        %s326 = scalar_select %p325, %s322, 2
        %s327 = smul.addr %s324, 3
        %s328 = sadd.s32 %s326, %s327
        %s329 = smul.addr %s328, 8
        %s330 = scalar_lea.vmem %s1, %s329
        %s331 = sadd.s32 %s25, 1
        %s332 = smul.u32 %s331, 2
        %s333 = smul.u32 2, %s25
        %v334 = vld [vmem:[%s315] sm:$0xff]
        %v335 = vld [vmem:[%s315 + $0x8] sm:$0xff]
        %vm336 = vcmask 64512
        %337 = vst.msk [vmem:[#allocation2] sm:$0xff] %vm336, %v334
        %338 = vst.msk [vmem:[#allocation2 + $0x8] sm:$0xff] %vm336, %v335
        %v339 = vld [vmem:[%s330] sm:$0xff]
        %340 = vst.msk [vmem:[#allocation2 + $0x10] sm:$0xff] %vm336, %v339
        %v341 = vld [vmem:[#allocation2] sm:$0xff]
        %v342 = vld [vmem:[#allocation2 + $0x8] sm:$0xff]
        %v343 = vld [vmem:[#allocation2 + $0x10] sm:$0xff]
        %v344 = vld [vmem:[%s2] sm:$0xff]
        %s345 = scalar_lea.vmem %s2, 8
        %v346 = vld [vmem:[%s345] sm:$0xff]
        %vm350 = vcmask 1046528
        %v351 = vrot.slane %v341, 1
        %v352 = vrot.slane %v342, 1
        %v353 = vsel %vm350, %v351, %v352
        %v354 = vrot.slane %v343, 1
        %v355 = vsel %vm350, %v352, %v354
        %v356 = vsel %vm336, %v353, 0
        %v358 = vsel %vm336, %v355, 0
        %v360 = vsel %vm336, %v354, 0
        %362 = vmatprep.subr.mxu0 0.0
        %363 = vmatpush1.msra.mxu0 0.0
        %364 = vmatprep.subr.mxu0 0.0
        %365 = vmatpush1.msra.mxu0 0.0
        %366 = vmatprep.subr.mxu0 0.0
        %367 = vmatpush1.msra.mxu0 0.0
        %368 = vmatprep.subr.mxu0 0.0
        %369 = vmatpush1.msra.mxu0 0.0
        %370 = vmatprep.subr.mxu0 0.0
        %371 = vmatpush1.msra.mxu0 0.0
        %372 = vmatprep.subr.mxu0 0.0
        %373 = vmatpush1.msra.mxu0 0.0
        %374 = vmatprep.subr.mxu0 0.0
        %375 = vmatpush1.msra.mxu0 0.0
        %376 = vmatprep.subr.mxu0 0.0
        %377 = vmatpush1.msra.mxu0 0.0
        %378 = vmatprep.subr.mxu0 0.0
        %379 = vmatpush1.msra.mxu0 0.0
        %380 = vmatprep.subr.mxu0 0.0
        %381 = vmatpush1.msra.mxu0 0.0
        %382 = vmatprep.subr.mxu0 0.0
        %383 = vmatpush1.msra.mxu0 0.0
        %384 = vmatprep.subr.mxu0 0.0
        %385 = vmatpush1.msra.mxu0 0.0
        %386 = vmatprep.subr.mxu0 0.0
        %387 = vmatpush1.msra.mxu0 0.0
        %388 = vmatprep.subr.mxu0 0.0
        %389 = vmatpush1.msra.mxu0 0.0
        %390 = vmatprep.subr.mxu0 0.0
        %391 = vmatpush1.msra.mxu0 0.0
        %392 = vmatprep.subr.mxu0 0.0
        %393 = vmatpush1.msra.mxu0 %v346
        %394 = vmatprep.subr.mxu0 0.0
        %395 = vmatpush2.msra.mxu0 0.0
        %396 = vmatprep.subr.mxu0 0.0
        %397 = vmatpush2.msra.mxu0 0.0
        %398 = vmatprep.subr.mxu0 0.0
        %399 = vmatpush2.msra.mxu0 0.0
        %400 = vmatprep.subr.mxu0 0.0
        %401 = vmatpush2.msra.mxu0 0.0
        %402 = vmatprep.subr.mxu0 0.0
        %403 = vmatpush2.msra.mxu0 0.0
        %404 = vmatprep.subr.mxu0 0.0
        %405 = vmatpush2.msra.mxu0 0.0
        %406 = vmatprep.subr.mxu0 0.0
        %407 = vmatpush2.msra.mxu0 0.0
        %408 = vmatprep.subr.mxu0 0.0
        %409 = vmatpush2.msra.mxu0 0.0
        %410 = vmatprep.subr.mxu0 0.0
        %411 = vmatpush2.msra.mxu0 0.0
        %412 = vmatprep.subr.mxu0 0.0
        %413 = vmatpush2.msra.mxu0 0.0
        %414 = vmatprep.subr.mxu0 0.0
        %415 = vmatpush2.msra.mxu0 0.0
        %416 = vmatprep.subr.mxu0 0.0
        %417 = vmatpush2.msra.mxu0 0.0
        %418 = vmatprep.subr.mxu0 0.0
        %419 = vmatpush2.msra.mxu0 0.0
        %420 = vmatprep.subr.mxu0 0.0
        %421 = vmatpush2.msra.mxu0 0.0
        %422 = vmatprep.subr.mxu0 0.0
        %423 = vmatpush2.msra.mxu0 0.0
        %424 = vmatprep.subr.mxu0 0.0
        %425 = vmatpush2.msra.mxu0 0.0
        %426 = vmatprep.mubr.f32.mxu0 0.0
        %427 = vmatmul.mubr.f32.gmra.mxu0 %v356
        %v428 = vpop.f32.mrf.mxu0
        %v429 = vadd.f32 0.0, %v428
        %v430 = vpop.f32.mrf.mxu0
        %431 = vmatprep.mubr.f32.mxu0 0.0
        %432 = vmatmul.mubr.f32.gmra.mxu0 %v358
        %v433 = vpop.f32.mrf.mxu0
        %v434 = vadd.f32 0.0, %v433
        %v435 = vpop.f32.mrf.mxu0
        %436 = vmatprep.mubr.f32.mxu0 0.0
        %437 = vmatmul.mubr.f32.gmra.mxu0 %v360
        %v438 = vpop.f32.mrf.mxu0
        %v439 = vadd.f32 0.0, %v438
        %v440 = vpop.f32.mrf.mxu0
        %441 = vdwg.mxu0
        %v442 = vsel %vm336, %v341, 0
        %v444 = vsel %vm336, %v342, 0
        %v446 = vsel %vm336, %v343, 0
        %448 = vmatprep.subr.mxu0 0.0
        %449 = vmatpush1.msra.mxu0 0.0
        %450 = vmatprep.subr.mxu0 0.0
        %451 = vmatpush1.msra.mxu0 0.0
        %452 = vmatprep.subr.mxu0 0.0
        %453 = vmatpush1.msra.mxu0 0.0
        %454 = vmatprep.subr.mxu0 0.0
        %455 = vmatpush1.msra.mxu0 0.0
        %456 = vmatprep.subr.mxu0 0.0
        %457 = vmatpush1.msra.mxu0 0.0
        %458 = vmatprep.subr.mxu0 0.0
        %459 = vmatpush1.msra.mxu0 0.0
        %460 = vmatprep.subr.mxu0 0.0
        %461 = vmatpush1.msra.mxu0 0.0
        %462 = vmatprep.subr.mxu0 0.0
        %463 = vmatpush1.msra.mxu0 0.0
        %464 = vmatprep.subr.mxu0 0.0
        %465 = vmatpush1.msra.mxu0 0.0
        %466 = vmatprep.subr.mxu0 0.0
        %467 = vmatpush1.msra.mxu0 0.0
        %468 = vmatprep.subr.mxu0 0.0
        %469 = vmatpush1.msra.mxu0 0.0
        %470 = vmatprep.subr.mxu0 0.0
        %471 = vmatpush1.msra.mxu0 0.0
        %472 = vmatprep.subr.mxu0 0.0
        %473 = vmatpush1.msra.mxu0 0.0
        %474 = vmatprep.subr.mxu0 0.0
        %475 = vmatpush1.msra.mxu0 0.0
        %476 = vmatprep.subr.mxu0 0.0
        %477 = vmatpush1.msra.mxu0 0.0
        %478 = vmatprep.subr.mxu0 0.0
        %479 = vmatpush1.msra.mxu0 %v344
        %480 = vmatprep.subr.mxu0 0.0
        %481 = vmatpush2.msra.mxu0 0.0
        %482 = vmatprep.subr.mxu0 0.0
        %483 = vmatpush2.msra.mxu0 0.0
        %484 = vmatprep.subr.mxu0 0.0
        %485 = vmatpush2.msra.mxu0 0.0
        %486 = vmatprep.subr.mxu0 0.0
        %487 = vmatpush2.msra.mxu0 0.0
        %488 = vmatprep.subr.mxu0 0.0
        %489 = vmatpush2.msra.mxu0 0.0
        %490 = vmatprep.subr.mxu0 0.0
        %491 = vmatpush2.msra.mxu0 0.0
        %492 = vmatprep.subr.mxu0 0.0
        %493 = vmatpush2.msra.mxu0 0.0
        %494 = vmatprep.subr.mxu0 0.0
        %495 = vmatpush2.msra.mxu0 0.0
        %496 = vmatprep.subr.mxu0 0.0
        %497 = vmatpush2.msra.mxu0 0.0
        %498 = vmatprep.subr.mxu0 0.0
        %499 = vmatpush2.msra.mxu0 0.0
        %500 = vmatprep.subr.mxu0 0.0
        %501 = vmatpush2.msra.mxu0 0.0
        %502 = vmatprep.subr.mxu0 0.0
        %503 = vmatpush2.msra.mxu0 0.0
        %504 = vmatprep.subr.mxu0 0.0
        %505 = vmatpush2.msra.mxu0 0.0
        %506 = vmatprep.subr.mxu0 0.0
        %507 = vmatpush2.msra.mxu0 0.0
        %508 = vmatprep.subr.mxu0 0.0
        %509 = vmatpush2.msra.mxu0 0.0
        %510 = vmatprep.subr.mxu0 0.0
        %511 = vmatpush2.msra.mxu0 0.0
        %512 = vmatprep.mubr.f32.mxu0 0.0
        %513 = vmatmul.mubr.f32.gmra.mxu0 %v442
        %v514 = vpop.f32.mrf.mxu0
        %v515 = vadd.f32 %v429, %v514
        %v516 = vpop.f32.mrf.mxu0
        %517 = vmatprep.mubr.f32.mxu0 0.0
        %518 = vmatmul.mubr.f32.gmra.mxu0 %v444
        %v519 = vpop.f32.mrf.mxu0
        %v520 = vadd.f32 %v434, %v519
        %v521 = vpop.f32.mrf.mxu0
        %522 = vmatprep.mubr.f32.mxu0 0.0
        %523 = vmatmul.mubr.f32.gmra.mxu0 %v446
        %v524 = vpop.f32.mrf.mxu0
        %v525 = vadd.f32 %v439, %v524
        %v526 = vpop.f32.mrf.mxu0
        %527 = vdwg.mxu0
        %s528 = scalar_lea.vmem %s2, 16
        %v529 = vld [vmem:[%s528] sm:$0xff]
        %vm530 = vcmask 1045504
        %v531 = vrot.slane %v341, 2
        %v532 = vrot.slane %v342, 2
        %v533 = vsel %vm530, %v531, %v532
        %v534 = vrot.slane %v343, 2
        %v535 = vsel %vm530, %v532, %v534
        %v536 = vsel %vm336, %v533, 0
        %v538 = vsel %vm336, %v535, 0
        %v540 = vsel %vm336, %v534, 0
        %542 = vmatprep.subr.mxu0 0.0
        %543 = vmatpush1.msra.mxu0 0.0
        %544 = vmatprep.subr.mxu0 0.0
        %545 = vmatpush1.msra.mxu0 0.0
        %546 = vmatprep.subr.mxu0 0.0
        %547 = vmatpush1.msra.mxu0 0.0
        %548 = vmatprep.subr.mxu0 0.0
        %549 = vmatpush1.msra.mxu0 0.0
        %550 = vmatprep.subr.mxu0 0.0
        %551 = vmatpush1.msra.mxu0 0.0
        %552 = vmatprep.subr.mxu0 0.0
        %553 = vmatpush1.msra.mxu0 0.0
        %554 = vmatprep.subr.mxu0 0.0
        %555 = vmatpush1.msra.mxu0 0.0
        %556 = vmatprep.subr.mxu0 0.0
        %557 = vmatpush1.msra.mxu0 0.0
        %558 = vmatprep.subr.mxu0 0.0
        %559 = vmatpush1.msra.mxu0 0.0
        %560 = vmatprep.subr.mxu0 0.0
        %561 = vmatpush1.msra.mxu0 0.0
        %562 = vmatprep.subr.mxu0 0.0
        %563 = vmatpush1.msra.mxu0 0.0
        %564 = vmatprep.subr.mxu0 0.0
        %565 = vmatpush1.msra.mxu0 0.0
        %566 = vmatprep.subr.mxu0 0.0
        %567 = vmatpush1.msra.mxu0 0.0
        %568 = vmatprep.subr.mxu0 0.0
        %569 = vmatpush1.msra.mxu0 0.0
        %570 = vmatprep.subr.mxu0 0.0
        %571 = vmatpush1.msra.mxu0 0.0
        %572 = vmatprep.subr.mxu0 0.0
        %573 = vmatpush1.msra.mxu0 %v529
        %574 = vmatprep.subr.mxu0 0.0
        %575 = vmatpush2.msra.mxu0 0.0
        %576 = vmatprep.subr.mxu0 0.0
        %577 = vmatpush2.msra.mxu0 0.0
        %578 = vmatprep.subr.mxu0 0.0
        %579 = vmatpush2.msra.mxu0 0.0
        %580 = vmatprep.subr.mxu0 0.0
        %581 = vmatpush2.msra.mxu0 0.0
        %582 = vmatprep.subr.mxu0 0.0
        %583 = vmatpush2.msra.mxu0 0.0
        %584 = vmatprep.subr.mxu0 0.0
        %585 = vmatpush2.msra.mxu0 0.0
        %586 = vmatprep.subr.mxu0 0.0
        %587 = vmatpush2.msra.mxu0 0.0
        %588 = vmatprep.subr.mxu0 0.0
        %589 = vmatpush2.msra.mxu0 0.0
        %590 = vmatprep.subr.mxu0 0.0
        %591 = vmatpush2.msra.mxu0 0.0
        %592 = vmatprep.subr.mxu0 0.0
        %593 = vmatpush2.msra.mxu0 0.0
        %594 = vmatprep.subr.mxu0 0.0
        %595 = vmatpush2.msra.mxu0 0.0
        %596 = vmatprep.subr.mxu0 0.0
        %597 = vmatpush2.msra.mxu0 0.0
        %598 = vmatprep.subr.mxu0 0.0
        %599 = vmatpush2.msra.mxu0 0.0
        %600 = vmatprep.subr.mxu0 0.0
        %601 = vmatpush2.msra.mxu0 0.0
        %602 = vmatprep.subr.mxu0 0.0
        %603 = vmatpush2.msra.mxu0 0.0
        %604 = vmatprep.subr.mxu0 0.0
        %605 = vmatpush2.msra.mxu0 0.0
        %606 = vmatprep.mubr.f32.mxu0 0.0
        %607 = vmatmul.mubr.f32.gmra.mxu0 %v536
        %v608 = vpop.f32.mrf.mxu0
        %v609 = vadd.f32 0.0, %v608
        %v610 = vpop.f32.mrf.mxu0
        %611 = vmatprep.mubr.f32.mxu0 0.0
        %612 = vmatmul.mubr.f32.gmra.mxu0 %v538
        %v613 = vpop.f32.mrf.mxu0
        %v614 = vadd.f32 0.0, %v613
        %v615 = vpop.f32.mrf.mxu0
        %616 = vmatprep.mubr.f32.mxu0 0.0
        %617 = vmatmul.mubr.f32.gmra.mxu0 %v540
        %v618 = vpop.f32.mrf.mxu0
        %v619 = vadd.f32 0.0, %v618
        %v620 = vpop.f32.mrf.mxu0
        %621 = vdwg.mxu0
        %v622 = vadd.f32 %v515, %v609
        %v623 = vadd.f32 %v520, %v614
        %v624 = vadd.f32 %v525, %v619
        %v625 = vld [vmem:[%s4] sm:$0x1]
        %v626 = vlaneseq
        %v627 = vshrl.u32 %v626, 7
        %v628 = vsub.s32 0, %v627
        %v629 = vrot.slane %v625, %v628
        %v630 = vadd.f32 %v622, %v629
        %v631 = vadd.f32 %v623, %v629
        %v632 = vadd.f32 %v624, %v629
        %633 = vst [vmem:[#allocation3] sm:$0xff] %v630
        %634 = vst [vmem:[#allocation3 + $0x8] sm:$0xff] %v631
        %635 = vst [vmem:[#allocation3 + $0x10] sm:$0x3] %v632
        %p636 = scmp.eq.s32.totalorder %s25, 0
        // Predicated region
        $region45: #{tpu_custom_call.1} parent=39 // pred_check
          %p637 = pneg %p636
        $region46: #{tpu_custom_call.1} parent=39 // pred_check_branch
          %639 = sbr.rel (%p637) target = $region48
        $region47: #{tpu_custom_call.1} parent=39 // pred_region
          %640 = vst [vmem:[#allocation3] sm:$0x1] 0.0
          %v641 = vld [vmem:[#allocation3 + $0x1] sm:$0x1]
          %v642 = vld [vmem:[%s4 + $0x2] sm:$0x1]
          %v643 = vsub.f32 %v641, %v642
          %644 = vst [vmem:[#allocation3 + $0x1] sm:$0x1] %v643
        $region48: #{tpu_custom_call.1} parent=39 // pred_fallthru
          _
        %s645 = smul.u32 %s25, 16
        %s646 = ssub.s32 8, %s645
        %p647 = scmp.ge.s32.totalorder %s646, 0
        %p648 = scmp.le.s32.totalorder %s646, 17
        %p649 = pnand %p647, %p648
        %p650 = pneg %p649
        // Predicated region
        $region49: #{tpu_custom_call.1} parent=39 // pred_check
          _
        $region50: #{tpu_custom_call.1} parent=39 // pred_check_branch
          %652 = sbr.rel (%p649) target = $region52
        $region51: #{tpu_custom_call.1} parent=39 // pred_region
          %v653 = vlaneseq
          %v654 = vshrl.u32 %v653, 7
          %v655 = vadd.s32 %v654, 8
          %v656 = vadd.s32 %v654, 16
          %v657 = vld [vmem:[#allocation3] sm:$0xff]
          %v658 = vld [vmem:[#allocation3 + $0x8] sm:$0xff]
          %v659 = vld [vmem:[#allocation3 + $0x10] sm:$0x3]
          %v660 = vstv %s646
          %vm661 = vcmp.eq.s32.totalorder %v654, %v660
          %vm662 = vcmp.eq.s32.totalorder %v655, %v660
          %vm663 = vcmp.eq.s32.totalorder %v656, %v660
          %v664 = vsel %vm661, 1.0, 0.0
          %v665 = vsel %vm662, 1.0, 0.0
          %v666 = vsel %vm663, 1.0, 0.0
          %v667 = vld [vmem:[%s4 + $0x3] sm:$0x1]
          %v668 = vlaneseq
          %v669 = vshrl.u32 %v668, 7
          %v670 = vsub.s32 0, %v669
          %v671 = vrot.slane %v667, %v670
          %v672 = vmul.f32 %v664, %v671
          %v673 = vmul.f32 %v665, %v671
          %v674 = vmul.f32 %v666, %v671
          %v675 = vsub.f32 %v657, %v672
          %v676 = vsub.f32 %v658, %v673
          %v677 = vsub.f32 %v659, %v674
          %678 = vst [vmem:[#allocation3] sm:$0xff] %v675
          %679 = vst [vmem:[#allocation3 + $0x8] sm:$0xff] %v676
          %680 = vst [vmem:[#allocation3 + $0x10] sm:$0x3] %v677
        $region52: #{tpu_custom_call.1} parent=39 // pred_fallthru
          _
        // Predicated region
        $region53: #{tpu_custom_call.1} parent=39 // pred_check
          %p681 = pneg %p636
        $region54: #{tpu_custom_call.1} parent=39 // pred_check_branch
          %683 = sbr.rel (%p681) target = $region56
        $region55: #{tpu_custom_call.1} parent=39 // pred_region
          %v684 = vlaneseq
          %v685 = vshrl.u32 %v684, 7
          %v686 = vadd.s32 %v685, 8
          %v687 = vadd.s32 %v685, 16
          %v688 = vstv %s646
          %vm689 = vcmp.gt.s32.totalorder %v685, %v688
          %vm690 = vcmp.gt.s32.totalorder %v686, %v688
          %vm691 = vcmp.gt.s32.totalorder %v687, %v688
          %v692 = vld [vmem:[#allocation3] sm:$0xff]
          %v693 = vld [vmem:[#allocation3 + $0x8] sm:$0xff]
          %v694 = vld [vmem:[#allocation3 + $0x10] sm:$0x3]
          %v695 = vsel %vm689, 1, 0
          %v696 = vsel %vm690, 1, 0
          %v697 = vsel %vm691, 1, 0
          %vm698 = vcmp.eq.s32.totalorder %v695, 1
          %vm699 = vcmp.eq.s32.totalorder %v696, 1
          %vm700 = vcmp.eq.s32.totalorder %v697, 1
          %v701 = vsel %vm698, 0.0, %v692
          %v702 = vsel %vm699, 0.0, %v693
          %v703 = vsel %vm700, 0.0, %v694
          %704 = vst [vmem:[#allocation3] sm:$0xff] %v701
          %705 = vst [vmem:[#allocation3 + $0x8] sm:$0xff] %v702
          %706 = vst [vmem:[#allocation3 + $0x10] sm:$0x3] %v703
        $region56: #{tpu_custom_call.1} parent=39 // pred_fallthru
          _
        %v707 = vld [vmem:[#allocation3] sm:$0xff]
        %v708 = vld [vmem:[#allocation3 + $0x8] sm:$0xff]
        %v709 = vld [vmem:[#allocation3 + $0x10] sm:$0x3]
        %v710 = vmax.f32 %v707, 0.0
        %v711 = vmax.f32 %v708, 0.0
        %v712 = vmax.f32 %v709, 0.0
        %v713 = vld [vmem:[#allocation4] sm:$0xff]
        %v714 = vld [vmem:[#allocation4 + $0x8] sm:$0xff]
        %v715 = vld [vmem:[#allocation4 + $0x10] sm:$0xff]
        %v716 = vld [vmem:[#allocation4 + $0x18] sm:$0xff]
        %v717 = vld [vmem:[#allocation4 + $0x20] sm:$0xff]
        %v718 = vld [vmem:[#allocation4 + $0x28] sm:$0xff]
        %v719 = vld [vmem:[#allocation4 + $0x30] sm:$0xff]
        %v720 = vld [vmem:[#allocation4 + $0x38] sm:$0xff]
        %v721 = vld [vmem:[#allocation4 + $0x40] sm:$0xff]
        %v722 = vld [vmem:[#allocation4 + $0x48] sm:$0xff]
        %v723 = vld [vmem:[#allocation4 + $0x50] sm:$0xff]
        %v724 = vld [vmem:[#allocation4 + $0x58] sm:$0xff]
        %v725 = vld [vmem:[#allocation4 + $0x60] sm:$0xff]
        %v726 = vld [vmem:[#allocation4 + $0x68] sm:$0xff]
        %v727 = vld [vmem:[#allocation4 + $0x70] sm:$0xff]
        %v728 = vld [vmem:[#allocation4 + $0x78] sm:$0xff]
        %s729 = scalar_lea.vmem [#allocation4], 128
        %v730 = vld [vmem:[%s729] sm:$0xff]
        %v731 = vld [vmem:[%s729 + $0x8] sm:$0xff]
        %v732 = vld [vmem:[%s729 + $0x10] sm:$0xff]
        %v733 = vld [vmem:[%s729 + $0x18] sm:$0xff]
        %v734 = vld [vmem:[%s729 + $0x20] sm:$0xff]
        %v735 = vld [vmem:[%s729 + $0x28] sm:$0xff]
        %v736 = vld [vmem:[%s729 + $0x30] sm:$0xff]
        %v737 = vld [vmem:[%s729 + $0x38] sm:$0xff]
        %v738 = vld [vmem:[%s729 + $0x40] sm:$0xff]
        %v739 = vld [vmem:[%s729 + $0x48] sm:$0xff]
        %v740 = vld [vmem:[%s729 + $0x50] sm:$0xff]
        %v741 = vld [vmem:[%s729 + $0x58] sm:$0xff]
        %v742 = vld [vmem:[%s729 + $0x60] sm:$0xff]
        %v743 = vld [vmem:[%s729 + $0x68] sm:$0xff]
        %v744 = vld [vmem:[%s729 + $0x70] sm:$0xff]
        %v745 = vld [vmem:[%s729 + $0x78] sm:$0xff]
        %v749 = vrot.slane %v710, 1
        %v750 = vrot.slane %v711, 1
        %v751 = vsel %vm350, %v749, %v750
        %v752 = vrot.slane %v712, 1
        %v753 = vsel %vm350, %v750, %v752
        %756 = vmatprep.subr.mxu0 0.0
        %757 = vmatpush1.msra.mxu0 %v745
        %758 = vmatprep.subr.mxu0 0.0
        %759 = vmatpush1.msra.mxu0 %v744
        %760 = vmatprep.subr.mxu0 0.0
        %761 = vmatpush1.msra.mxu0 %v743
        %762 = vmatprep.subr.mxu0 0.0
        %763 = vmatpush1.msra.mxu0 %v742
        %764 = vmatprep.subr.mxu0 0.0
        %765 = vmatpush1.msra.mxu0 %v741
        %766 = vmatprep.subr.mxu0 0.0
        %767 = vmatpush1.msra.mxu0 %v740
        %768 = vmatprep.subr.mxu0 0.0
        %769 = vmatpush1.msra.mxu0 %v739
        %770 = vmatprep.subr.mxu0 0.0
        %771 = vmatpush1.msra.mxu0 %v738
        %772 = vmatprep.subr.mxu0 0.0
        %773 = vmatpush1.msra.mxu0 %v737
        %774 = vmatprep.subr.mxu0 0.0
        %775 = vmatpush1.msra.mxu0 %v736
        %776 = vmatprep.subr.mxu0 0.0
        %777 = vmatpush1.msra.mxu0 %v735
        %778 = vmatprep.subr.mxu0 0.0
        %779 = vmatpush1.msra.mxu0 %v734
        %780 = vmatprep.subr.mxu0 0.0
        %781 = vmatpush1.msra.mxu0 %v733
        %782 = vmatprep.subr.mxu0 0.0
        %783 = vmatpush1.msra.mxu0 %v732
        %784 = vmatprep.subr.mxu0 0.0
        %785 = vmatpush1.msra.mxu0 %v731
        %786 = vmatprep.subr.mxu0 0.0
        %787 = vmatpush1.msra.mxu0 %v730
        %788 = vmatprep.subr.mxu0 0.0
        %789 = vmatpush2.msra.mxu0 0.0
        %790 = vmatprep.subr.mxu0 0.0
        %791 = vmatpush2.msra.mxu0 0.0
        %792 = vmatprep.subr.mxu0 0.0
        %793 = vmatpush2.msra.mxu0 0.0
        %794 = vmatprep.subr.mxu0 0.0
        %795 = vmatpush2.msra.mxu0 0.0
        %796 = vmatprep.subr.mxu0 0.0
        %797 = vmatpush2.msra.mxu0 0.0
        %798 = vmatprep.subr.mxu0 0.0
        %799 = vmatpush2.msra.mxu0 0.0
        %800 = vmatprep.subr.mxu0 0.0
        %801 = vmatpush2.msra.mxu0 0.0
        %802 = vmatprep.subr.mxu0 0.0
        %803 = vmatpush2.msra.mxu0 0.0
        %804 = vmatprep.subr.mxu0 0.0
        %805 = vmatpush2.msra.mxu0 0.0
        %806 = vmatprep.subr.mxu0 0.0
        %807 = vmatpush2.msra.mxu0 0.0
        %808 = vmatprep.subr.mxu0 0.0
        %809 = vmatpush2.msra.mxu0 0.0
        %810 = vmatprep.subr.mxu0 0.0
        %811 = vmatpush2.msra.mxu0 0.0
        %812 = vmatprep.subr.mxu0 0.0
        %813 = vmatpush2.msra.mxu0 0.0
        %814 = vmatprep.subr.mxu0 0.0
        %815 = vmatpush2.msra.mxu0 0.0
        %816 = vmatprep.subr.mxu0 0.0
        %817 = vmatpush2.msra.mxu0 0.0
        %818 = vmatprep.subr.mxu0 0.0
        %819 = vmatpush2.msra.mxu0 0.0
        %820 = vmatprep.mubr.f32.mxu0 0.0
        %821 = vmatmul.mubr.f32.gmra.mxu0 %v751
        %v822 = vpop.f32.mrf.mxu0
        %v823 = vadd.f32 0.0, %v822
        %v824 = vpop.f32.mrf.mxu0
        %825 = vmatprep.mubr.f32.mxu0 0.0
        %826 = vmatmul.mubr.f32.gmra.mxu0 %v753
        %v827 = vpop.f32.mrf.mxu0
        %v828 = vadd.f32 0.0, %v827
        %v829 = vpop.f32.mrf.mxu0
        %830 = vdwg.mxu0
        %831 = vmatprep.subr.mxu0 0.0
        %832 = vmatpush1.msra.mxu0 %v728
        %833 = vmatprep.subr.mxu0 0.0
        %834 = vmatpush1.msra.mxu0 %v727
        %835 = vmatprep.subr.mxu0 0.0
        %836 = vmatpush1.msra.mxu0 %v726
        %837 = vmatprep.subr.mxu0 0.0
        %838 = vmatpush1.msra.mxu0 %v725
        %839 = vmatprep.subr.mxu0 0.0
        %840 = vmatpush1.msra.mxu0 %v724
        %841 = vmatprep.subr.mxu0 0.0
        %842 = vmatpush1.msra.mxu0 %v723
        %843 = vmatprep.subr.mxu0 0.0
        %844 = vmatpush1.msra.mxu0 %v722
        %845 = vmatprep.subr.mxu0 0.0
        %846 = vmatpush1.msra.mxu0 %v721
        %847 = vmatprep.subr.mxu0 0.0
        %848 = vmatpush1.msra.mxu0 %v720
        %849 = vmatprep.subr.mxu0 0.0
        %850 = vmatpush1.msra.mxu0 %v719
        %851 = vmatprep.subr.mxu0 0.0
        %852 = vmatpush1.msra.mxu0 %v718
        %853 = vmatprep.subr.mxu0 0.0
        %854 = vmatpush1.msra.mxu0 %v717
        %855 = vmatprep.subr.mxu0 0.0
        %856 = vmatpush1.msra.mxu0 %v716
        %857 = vmatprep.subr.mxu0 0.0
        %858 = vmatpush1.msra.mxu0 %v715
        %859 = vmatprep.subr.mxu0 0.0
        %860 = vmatpush1.msra.mxu0 %v714
        %861 = vmatprep.subr.mxu0 0.0
        %862 = vmatpush1.msra.mxu0 %v713
        %863 = vmatprep.subr.mxu0 0.0
        %864 = vmatpush2.msra.mxu0 0.0
        %865 = vmatprep.subr.mxu0 0.0
        %866 = vmatpush2.msra.mxu0 0.0
        %867 = vmatprep.subr.mxu0 0.0
        %868 = vmatpush2.msra.mxu0 0.0
        %869 = vmatprep.subr.mxu0 0.0
        %870 = vmatpush2.msra.mxu0 0.0
        %871 = vmatprep.subr.mxu0 0.0
        %872 = vmatpush2.msra.mxu0 0.0
        %873 = vmatprep.subr.mxu0 0.0
        %874 = vmatpush2.msra.mxu0 0.0
        %875 = vmatprep.subr.mxu0 0.0
        %876 = vmatpush2.msra.mxu0 0.0
        %877 = vmatprep.subr.mxu0 0.0
        %878 = vmatpush2.msra.mxu0 0.0
        %879 = vmatprep.subr.mxu0 0.0
        %880 = vmatpush2.msra.mxu0 0.0
        %881 = vmatprep.subr.mxu0 0.0
        %882 = vmatpush2.msra.mxu0 0.0
        %883 = vmatprep.subr.mxu0 0.0
        %884 = vmatpush2.msra.mxu0 0.0
        %885 = vmatprep.subr.mxu0 0.0
        %886 = vmatpush2.msra.mxu0 0.0
        %887 = vmatprep.subr.mxu0 0.0
        %888 = vmatpush2.msra.mxu0 0.0
        %889 = vmatprep.subr.mxu0 0.0
        %890 = vmatpush2.msra.mxu0 0.0
        %891 = vmatprep.subr.mxu0 0.0
        %892 = vmatpush2.msra.mxu0 0.0
        %893 = vmatprep.subr.mxu0 0.0
        %894 = vmatpush2.msra.mxu0 0.0
        %895 = vmatprep.mubr.f32.mxu0 0.0
        %896 = vmatmul.mubr.f32.gmra.mxu0 %v710
        %v897 = vpop.f32.mrf.mxu0
        %v898 = vadd.f32 %v823, %v897
        %v899 = vpop.f32.mrf.mxu0
        %900 = vmatprep.mubr.f32.mxu0 0.0
        %901 = vmatmul.mubr.f32.gmra.mxu0 %v711
        %v902 = vpop.f32.mrf.mxu0
        %v903 = vadd.f32 %v828, %v902
        %v904 = vpop.f32.mrf.mxu0
        %905 = vdwg.mxu0
        %s906 = scalar_lea.vmem [#allocation4], 256
        %v907 = vld [vmem:[%s906] sm:$0xff]
        %v908 = vld [vmem:[%s906 + $0x8] sm:$0xff]
        %v909 = vld [vmem:[%s906 + $0x10] sm:$0xff]
        %v910 = vld [vmem:[%s906 + $0x18] sm:$0xff]
        %v911 = vld [vmem:[%s906 + $0x20] sm:$0xff]
        %v912 = vld [vmem:[%s906 + $0x28] sm:$0xff]
        %v913 = vld [vmem:[%s906 + $0x30] sm:$0xff]
        %v914 = vld [vmem:[%s906 + $0x38] sm:$0xff]
        %v915 = vld [vmem:[%s906 + $0x40] sm:$0xff]
        %v916 = vld [vmem:[%s906 + $0x48] sm:$0xff]
        %v917 = vld [vmem:[%s906 + $0x50] sm:$0xff]
        %v918 = vld [vmem:[%s906 + $0x58] sm:$0xff]
        %v919 = vld [vmem:[%s906 + $0x60] sm:$0xff]
        %v920 = vld [vmem:[%s906 + $0x68] sm:$0xff]
        %v921 = vld [vmem:[%s906 + $0x70] sm:$0xff]
        %v922 = vld [vmem:[%s906 + $0x78] sm:$0xff]
        %v923 = vrot.slane %v710, 2
        %v924 = vrot.slane %v711, 2
        %v925 = vsel %vm530, %v923, %v924
        %v926 = vrot.slane %v712, 2
        %v927 = vsel %vm530, %v924, %v926
        %930 = vmatprep.subr.mxu0 0.0
        %931 = vmatpush1.msra.mxu0 %v922
        %932 = vmatprep.subr.mxu0 0.0
        %933 = vmatpush1.msra.mxu0 %v921
        %934 = vmatprep.subr.mxu0 0.0
        %935 = vmatpush1.msra.mxu0 %v920
        %936 = vmatprep.subr.mxu0 0.0
        %937 = vmatpush1.msra.mxu0 %v919
        %938 = vmatprep.subr.mxu0 0.0
        %939 = vmatpush1.msra.mxu0 %v918
        %940 = vmatprep.subr.mxu0 0.0
        %941 = vmatpush1.msra.mxu0 %v917
        %942 = vmatprep.subr.mxu0 0.0
        %943 = vmatpush1.msra.mxu0 %v916
        %944 = vmatprep.subr.mxu0 0.0
        %945 = vmatpush1.msra.mxu0 %v915
        %946 = vmatprep.subr.mxu0 0.0
        %947 = vmatpush1.msra.mxu0 %v914
        %948 = vmatprep.subr.mxu0 0.0
        %949 = vmatpush1.msra.mxu0 %v913
        %950 = vmatprep.subr.mxu0 0.0
        %951 = vmatpush1.msra.mxu0 %v912
        %952 = vmatprep.subr.mxu0 0.0
        %953 = vmatpush1.msra.mxu0 %v911
        %954 = vmatprep.subr.mxu0 0.0
        %955 = vmatpush1.msra.mxu0 %v910
        %956 = vmatprep.subr.mxu0 0.0
        %957 = vmatpush1.msra.mxu0 %v909
        %958 = vmatprep.subr.mxu0 0.0
        %959 = vmatpush1.msra.mxu0 %v908
        %960 = vmatprep.subr.mxu0 0.0
        %961 = vmatpush1.msra.mxu0 %v907
        %962 = vmatprep.subr.mxu0 0.0
        %963 = vmatpush2.msra.mxu0 0.0
        %964 = vmatprep.subr.mxu0 0.0
        %965 = vmatpush2.msra.mxu0 0.0
        %966 = vmatprep.subr.mxu0 0.0
        %967 = vmatpush2.msra.mxu0 0.0
        %968 = vmatprep.subr.mxu0 0.0
        %969 = vmatpush2.msra.mxu0 0.0
        %970 = vmatprep.subr.mxu0 0.0
        %971 = vmatpush2.msra.mxu0 0.0
        %972 = vmatprep.subr.mxu0 0.0
        %973 = vmatpush2.msra.mxu0 0.0
        %974 = vmatprep.subr.mxu0 0.0
        %975 = vmatpush2.msra.mxu0 0.0
        %976 = vmatprep.subr.mxu0 0.0
        %977 = vmatpush2.msra.mxu0 0.0
        %978 = vmatprep.subr.mxu0 0.0
        %979 = vmatpush2.msra.mxu0 0.0
        %980 = vmatprep.subr.mxu0 0.0
        %981 = vmatpush2.msra.mxu0 0.0
        %982 = vmatprep.subr.mxu0 0.0
        %983 = vmatpush2.msra.mxu0 0.0
        %984 = vmatprep.subr.mxu0 0.0
        %985 = vmatpush2.msra.mxu0 0.0
        %986 = vmatprep.subr.mxu0 0.0
        %987 = vmatpush2.msra.mxu0 0.0
        %988 = vmatprep.subr.mxu0 0.0
        %989 = vmatpush2.msra.mxu0 0.0
        %990 = vmatprep.subr.mxu0 0.0
        %991 = vmatpush2.msra.mxu0 0.0
        %992 = vmatprep.subr.mxu0 0.0
        %993 = vmatpush2.msra.mxu0 0.0
        %994 = vmatprep.mubr.f32.mxu0 0.0
        %995 = vmatmul.mubr.f32.gmra.mxu0 %v925
        %v996 = vpop.f32.mrf.mxu0
        %v997 = vadd.f32 0.0, %v996
        %v998 = vpop.f32.mrf.mxu0
        %999 = vmatprep.mubr.f32.mxu0 0.0
        %1000 = vmatmul.mubr.f32.gmra.mxu0 %v927
        %v1001 = vpop.f32.mrf.mxu0
        %v1002 = vadd.f32 0.0, %v1001
        %v1003 = vpop.f32.mrf.mxu0
        %1004 = vdwg.mxu0
        %v1005 = vadd.f32 %v898, %v997
        %v1006 = vadd.f32 %v903, %v1002
        %v1007 = vld [vmem:[%s4 + $0x1] sm:$0x1]
        %v1008 = vlaneseq
        %v1009 = vshrl.u32 %v1008, 7
        %v1010 = vsub.s32 0, %v1009
        %v1011 = vrot.slane %v1007, %v1010
        %v1012 = vadd.f32 %v1005, %v1011
        %v1013 = vadd.f32 %v1006, %v1011
        %v1014 = vmax.f32 %v1012, 0.0
        %v1015 = vmax.f32 %v1013, 0.0
        %1016 = vst [vmem:[%s302] sm:$0xff] %v1014
        %1017 = vst [vmem:[%s302 + $0x8] sm:$0xff] %v1015
        %s1018 = sand.u32 %s165, 1
        %s1019 = scalar_lea.sflag [#allocation6], %s1018
        %s1020 = sand.u32 %s165, 1
        %s1021 = smul.addr %s1020, 16
        %s1022 = scalar_lea.vmem [#allocation7], %s1021
        // Predicated region
        $region57: #{tpu_custom_call.1} parent=39 // pred_check
          %p1023 = pneg %p175
        $region58: #{tpu_custom_call.1} parent=39 // pred_check_branch
          %1025 = sbr.rel (%p1023) target = $region60
        $region59: #{tpu_custom_call.1} parent=39 // pred_region
          %s1026 = smul.u32 2, %s25
          %s1028 = ssub.s32 256, 256
          %1029 = vsyncadd %s1019, %s1028
          %s1030 = smul.addr %s24, 2
          %s1031 = sadd.s32 %s1026, %s1030
          %s1032 = smul.addr %s1031, 128
          %s1033 = scalar_lea.hbm %s5, %s1032
          %s1034 = sshll.u32 %s1022, 4
          %s1035 = int_to_ptr.vmem [resolvable:$true] %s1034
          %1040 = dma.vmem_to_hbm [thread:$0]  %s1035, 256, %s1033, %s1019, 128, 128, 8
        $region60: #{tpu_custom_call.1} parent=39 // pred_fallthru
          _
      $region40: #{tpu_custom_call.1} parent=5 // pred_fallthru
        _
      %p1041 = scmp.le.s32.totalorder 2, %s15
      // Predicated region
      $region61: #{tpu_custom_call.1} parent=5 // pred_check
        %p1042 = pneg %p1041
      $region62: #{tpu_custom_call.1} parent=5 // pred_check_branch
        %1044 = sbr.rel (%p1042) target = $region64
      $region63: #{tpu_custom_call.1} parent=5 // pred_region
        %s1045 = ssub.s32 %s15, 2
        // Predicated region
        $region65: #{tpu_custom_call.1} parent=63 // pred_check
          %p1046 = pneg %p181
        $region66: #{tpu_custom_call.1} parent=63 // pred_check_branch
          %1048 = sbr.rel (%p1046) target = $region68
        $region67: #{tpu_custom_call.1} parent=63 // pred_region
          %s1049 = sand.u32 %s166, 1
          %s1050 = scalar_lea.sflag [#allocation6], %s1049
          %s1051 = sand.u32 %s166, 1
          %s1052 = smul.addr %s1051, 16
          %s1053 = scalar_lea.vmem [#allocation7], %s1052
          %1054 = dma.done %s1050, 256
        $region68: #{tpu_custom_call.1} parent=63 // pred_fallthru
          _
      $region64: #{tpu_custom_call.1} parent=5 // pred_fallthru
        _
    $region6: #{tpu_custom_call.1} parent=1 // loop_footer
      %s19 = sadd.s32 1, %s15
    $region7: #{tpu_custom_call.1} parent=1 // loop_footer_branch
      %14 = sbr.rel target = $region3
    $region8: #{tpu_custom_call.1} parent=1 // loop_exit
      _
    %1055 = vsyncpa [#allocation5], 1
    %s1056 = scalar_lea.sflag [#allocation5], 1
    %1057 = vsyncpa %s1056, 1
    %1058 = vsyncpa [#allocation6], 1
    %s1059 = scalar_lea.sflag [#allocation6], 1
    %1060 = vsyncpa %s1059, 1

</llo_original>
